<compile_context>
chip_gen: v6e
topology: v6e:2x2x1
jax: 0.10.0
libtpu: 0.0.40
codegen_flags: <defaults>
</compile_context>

<pallas_src>
import jax
import jax.numpy as jnp
from jax.experimental import pallas as pl
from jax.experimental.pallas import tpu as pltpu

_LANE = 128


def _cdiv(a, b):
    return -(-a // b)


def _make_kernel(C, s_tile, acc_rows, spp, hw_valid, needs_mask, approx_recip):
    fold = s_tile != acc_rows          # then acc_rows == 8 and s_tile % 8 == 0
    k = s_tile // acc_rows if fold else 1

    def kernel(logits_ref, labels_ref, out_ref, inter_acc, card_acc):
        # logits_ref : (C, s_tile, 128)  input dtype
        # labels_ref : (1, s_tile, 128)  int8/uint8/int32
        # out_ref    : (2, C, acc_rows, 128) f32  (written once per part)
        # inter_acc / card_acc : (C, acc_rows, 128) f32 narrow accumulators
        p = pl.program_id(0)
        b = pl.program_id(1)
        j = pl.program_id(2)

        @pl.when((b == 0) & (j == 0))
        def _init():
            inter_acc[...] = jnp.zeros_like(inter_acc)
            card_acc[...] = jnp.zeros_like(card_acc)

        if needs_mask:
            blk = p * spp + j                      # UNclamped block id -> global pixel idx
            row = jax.lax.broadcasted_iota(jnp.int32, (s_tile, _LANE), 0)
            lane = jax.lax.broadcasted_iota(jnp.int32, (s_tile, _LANE), 1)
            px = (blk * s_tile + row) * _LANE + lane
            valid = px < hw_valid                  # bool (s_tile, 128)
            validf = valid.astype(jnp.float32)

        # --- softmax over the class axis, unrolled (C small & static) -------
        xs = []
        for c in range(C):
            xc = logits_ref[c].astype(jnp.float32)          # dense (s_tile, 128) slab
            if needs_mask:
                xc = jnp.where(valid, xc, 0.0)              # garbage-safe, BEFORE exp
            xs.append(xc)
        m = xs[0]
        for c in range(1, C):
            m = jnp.maximum(m, xs[c])
        es = [jnp.exp(xc - m) for xc in xs]
        den = es[0]
        for c in range(1, C):
            den = den + es[c]
        inv = pl.reciprocal(den, approx=approx_recip)

        labels = labels_ref[0].astype(jnp.int32)            # (s_tile, 128)

        # --- per-class terms, folded to one (acc_rows, 128) vreg each -------
        for c in range(C):
            pc = es[c] * inv                                # softmax prob of class c
            hit = labels == c                               # one-hot never materialised
            inter_t = jnp.where(hit, pc, 0.0)
            card_t = pc + jnp.where(hit, 1.0, 0.0)
            if needs_mask:
                inter_t = inter_t * validf
                card_t = card_t * validf
            if fold:
                inter_f = jnp.sum(inter_t.reshape(k, acc_rows, _LANE), axis=0)
                card_f = jnp.sum(card_t.reshape(k, acc_rows, _LANE), axis=0)
            else:
                inter_f = inter_t
                card_f = card_t
            inter_acc[c] = inter_acc[c] + inter_f
            card_acc[c] = card_acc[c] + card_f

        @pl.when((b == pl.num_programs(1) - 1) & (j == pl.num_programs(2) - 1))
        def _finalize():
            out_ref[0] = inter_acc[...]
            out_ref[1] = card_acc[...]

    return kernel


def generalized_dice_loss(logits, true, eps=1e-5, *,
                          max_block_bytes=8 << 20,
                          vmem_working_budget=32 << 20,
                          num_parts=1,
                          approx_reciprocal=False):
    """logits: [B, C, H, W] float (f32/bf16); true: [B, 1, H, W] int labels."""
    B, C, H, W = logits.shape
    HW = H * W

    # Labels: keep int8/uint8 as-is (1/4 the HBM bytes, no widening copy);
    # anything else becomes int32.
    lab = true.reshape(B, 1, HW)
    if lab.dtype.name not in ("int8", "uint8", "int32"):
        lab = lab.astype(jnp.int32)

    logits3 = logits.reshape(B, C, HW)              # free contiguous reshape

    # Lane alignment: pad only the <128-pixel remainder (rare case).
    S = _cdiv(HW, _LANE)
    HW_lane = S * _LANE
    if HW_lane != HW:
        logits3 = jnp.pad(logits3, ((0, 0), (0, 0), (0, HW_lane - HW)))
        lab = jnp.pad(lab, ((0, 0), (0, 0), (0, HW_lane - HW)))
    logits4 = logits3.reshape(B, C, S, _LANE)
    labels4 = lab.reshape(B, 1, S, _LANE)

    in_itemsize = jnp.dtype(logits.dtype).itemsize
    lab_itemsize = jnp.dtype(labels4.dtype).itemsize

    # ---- pixel-row tiling (rows of 128 pixels on the sublane axis) ---------
    if S <= 8:
        s_tile = S
    else:
        rows_blk = max(8, (max_block_bytes // (C * _LANE * in_itemsize)) // 8 * 8)
        per_row = _LANE * (2 * C * in_itemsize + 2 * lab_itemsize + (2 * C + 6) * 4)
        rows_vmem = max(8, (vmem_working_budget // per_row) // 8 * 8)
        s_tile = min(rows_blk, rows_vmem, (S // 8) * 8)
    acc_rows = 8 if s_tile % 8 == 0 else s_tile

    n_blocks = _cdiv(S, s_tile)
    num_parts = max(1, min(int(num_parts), n_blocks))
    spp = _cdiv(n_blocks, num_parts)                 # s-blocks per part
    total_blocks = num_parts * spp

    needs_mask = (HW_lane != HW) or (n_blocks * s_tile != S) or (total_blocks != n_blocks)
    needs_clamp = total_blocks > n_blocks

    def data_index(p_, b_, j_):
        blk = p_ * spp + j_
        if needs_clamp:                              # overflow blocks re-read the last
            blk = jnp.minimum(blk, n_blocks - 1)     # valid block; the kernel masks them
        return (b_, 0, blk, 0)

    kernel = _make_kernel(C, s_tile, acc_rows, spp, HW, needs_mask, approx_reciprocal)

    # ---- VMEM limit from actual buffer sizes (not the physical maximum) ----
    blk_bytes = C * s_tile * _LANE * in_itemsize         # one logits block
    lab_bytes = s_tile * _LANE * lab_itemsize             # one labels block
    interm = (2 * C + 6) * s_tile * _LANE * 4              # f32 intermediates estimate
    acc_out = 3 * (2 * C * acc_rows * _LANE * 4)           # scratch + out block
    est = 2 * (blk_bytes + lab_bytes) + interm + acc_out   # inputs double-buffered
    vmem_limit = int(min(48 << 20, max(16 << 20, est * 3 // 2 + (2 << 20))))

    sem0 = pltpu.CORE_PARALLEL if num_parts > 1 else pltpu.ARBITRARY
    dim_sem = (sem0, pltpu.ARBITRARY, pltpu.ARBITRARY)

    sums = pl.pallas_call(
        kernel,
        out_shape=jax.ShapeDtypeStruct((num_parts, 2, C, acc_rows, _LANE), jnp.float32),
        grid_spec=pltpu.PrefetchScalarGridSpec(
            num_scalar_prefetch=0,
            grid=(num_parts, B, spp),
            in_specs=[
                pl.BlockSpec((None, C, s_tile, _LANE), data_index),
                pl.BlockSpec((None, 1, s_tile, _LANE), data_index),
            ],
            out_specs=pl.BlockSpec((None, 2, C, acc_rows, _LANE),
                                   lambda p_, b_, j_: (p_, 0, 0, 0, 0)),
            scratch_shapes=[
                pltpu.VMEM((C, acc_rows, _LANE), jnp.float32),   # intersection acc
                pltpu.VMEM((C, acc_rows, _LANE), jnp.float32),   # cardinality acc
            ],
        ),
        compiler_params=pltpu.CompilerParams(
            dimension_semantics=dim_sem,
            vmem_limit_bytes=vmem_limit,
        ),
    )(logits4, labels4)

    totals = jnp.sum(sums, axis=(0, 3, 4))           # (2, C): sum parts + (rows, lanes)
    intersection = totals[0]
    cardinality = totals[1]
    dice = jnp.mean(2.0 * intersection / (cardinality + eps))
    return 1.0 - dice


def _reference(logits, true, eps=1e-5):
    B, C, H, W = logits.shape
    probas = jax.nn.softmax(logits.astype(jnp.float32), axis=1)
    one_hot = jax.nn.one_hot(true[:, 0], C, dtype=jnp.float32)   # [B,H,W,C]
    one_hot = jnp.transpose(one_hot, (0, 3, 1, 2))               # [B,C,H,W]
    dims = (0, 2, 3)
    inter = jnp.sum(probas * one_hot, axis=dims)
    card = jnp.sum(probas + one_hot, axis=dims)
    return 1.0 - jnp.mean(2.0 * inter / (card + eps))


if __name__ == "__main__":
    key = jax.random.PRNGKey(0)
    k1, k2, k3, k4, k5 = jax.random.split(key, 5)

    # Main test: B=2, C=4, H=W=16 (lane-aligned, no masking path).
    B, C, H, W = 2, 4, 16, 16
    logits = jax.random.normal(k1, (B, C, H, W), dtype=jnp.float32)
    true = jax.random.randint(k2, (B, 1, H, W), 0, C, dtype=jnp.int32)
    loss = jax.block_until_ready(generalized_dice_loss(logits, true))
    ref = _reference(logits, true)
    assert jnp.allclose(loss, ref, atol=1e-5, rtol=1e-5), (loss, ref)

    # Ragged path: H*W not a multiple of 128 -> small lane pad + in-kernel mask.
    B2, C2, H2, W2 = 2, 3, 10, 10
    logits2 = jax.random.normal(k3, (B2, C2, H2, W2), dtype=jnp.float32)
    true2 = jax.random.randint(k4, (B2, 1, H2, W2), 0, C2, dtype=jnp.int32)
    loss2 = jax.block_until_ready(generalized_dice_loss(logits2, true2))
    ref2 = _reference(logits2, true2)
    assert jnp.allclose(loss2, ref2, atol=1e-5, rtol=1e-5), (loss2, ref2)

    # Native-dtype HBM reads: bf16 logits stay bf16 in HBM, f32 compute in-kernel.
    logits3 = jax.random.normal(k5, (B, C, H, W), dtype=jnp.bfloat16)
    loss3 = jax.block_until_ready(generalized_dice_loss(logits3, true))
    ref3 = _reference(logits3, true)
    assert jnp.allclose(loss3, ref3, atol=1e-4, rtol=1e-4), (loss3, ref3)

    print("KERNEL_OK")
</pallas_src>

<mosaic_0001>
module attributes {stable_mosaic.version = 11 : i64} {
  func.func @kernel(%arg0: i32, %arg1: i32, %arg2: i32, %arg3: memref<1x4x2x128xf32, #tpu.memory_space<vmem>>, %arg4: memref<1x1x2x128xi32, #tpu.memory_space<vmem>>, %arg5: memref<1x2x4x2x128xf32, #tpu.memory_space<vmem>>, %arg6: memref<4x2x128xf32, #tpu.memory_space<vmem>>, %arg7: memref<4x2x128xf32, #tpu.memory_space<vmem>>) attributes {dimension_semantics = [#tpu.dimension_semantics<arbitrary>, #tpu.dimension_semantics<arbitrary>, #tpu.dimension_semantics<arbitrary>], iteration_bounds = array<i64: 1, 2, 1>, scalar_prefetch = 0 : i64, scratch_operands = 2 : i64, tpu.core_type = #tpu.core_type<tc>, window_params = [{transform_indices = @transform_0, window_bounds = array<i64: 1, 4, 2, 128>}, {transform_indices = @transform_1, window_bounds = array<i64: 1, 1, 2, 128>}, {transform_indices = @transform_2, window_bounds = array<i64: 1, 2, 4, 2, 128>}]} {
    %c0_i32 = arith.constant 0 : i32
    %0 = arith.cmpi eq, %arg1, %c0_i32 : i32
    %c0_i32_0 = arith.constant 0 : i32
    %1 = arith.cmpi eq, %arg2, %c0_i32_0 : i32
    %2 = arith.andi %0, %1 : i1
    %3 = arith.extui %2 : i1 to i32
    %c0_i32_1 = arith.constant 0 : i32
    %4 = arith.cmpi ne, %3, %c0_i32_1 : i32
    scf.if %4 {
      %cst_81 = arith.constant 0.000000e+00 : f32
      %119 = vector.broadcast %cst_81 : f32 to vector<4x2x128xf32>
      %c0_82 = arith.constant 0 : index
      %c0_83 = arith.constant 0 : index
      %c0_84 = arith.constant 0 : index
      %120 = vector.load %arg6[%c0_82, %c0_83, %c0_84] : memref<4x2x128xf32, #tpu.memory_space<vmem>>, vector<4x2x128xf32>
      tpu.vector_store %arg6[%c0_82, %c0_83, %c0_84], %119 {strides = array<i32>} : memref<4x2x128xf32, #tpu.memory_space<vmem>>, vector<4x2x128xf32>,
      %cst_85 = arith.constant 0.000000e+00 : f32
      %121 = vector.broadcast %cst_85 : f32 to vector<4x2x128xf32>
      %c0_86 = arith.constant 0 : index
      %c0_87 = arith.constant 0 : index
      %c0_88 = arith.constant 0 : index
      %122 = vector.load %arg7[%c0_86, %c0_87, %c0_88] : memref<4x2x128xf32, #tpu.memory_space<vmem>>, vector<4x2x128xf32>
      tpu.vector_store %arg7[%c0_86, %c0_87, %c0_88], %121 {strides = array<i32>} : memref<4x2x128xf32, #tpu.memory_space<vmem>>, vector<4x2x128xf32>,
    } else {
    }
    %c0 = arith.constant 0 : index
    %c0_2 = arith.constant 0 : index
    %c0_3 = arith.constant 0 : index
    %c0_4 = arith.constant 0 : index
    %5 = vector.load %arg3[%c0, %c0_2, %c0_3, %c0_4] : memref<1x4x2x128xf32, #tpu.memory_space<vmem>>, vector<1x1x2x128xf32>
    %6 = vector.shape_cast %5 : vector<1x1x2x128xf32> to vector<2x128xf32>
    %c0_5 = arith.constant 0 : index
    %c1 = arith.constant 1 : index
    %c0_6 = arith.constant 0 : index
    %c0_7 = arith.constant 0 : index
    %7 = vector.load %arg3[%c0_5, %c1, %c0_6, %c0_7] : memref<1x4x2x128xf32, #tpu.memory_space<vmem>>, vector<1x1x2x128xf32>
    %8 = vector.shape_cast %7 : vector<1x1x2x128xf32> to vector<2x128xf32>
    %c0_8 = arith.constant 0 : index
    %c2 = arith.constant 2 : index
    %c0_9 = arith.constant 0 : index
    %c0_10 = arith.constant 0 : index
    %9 = vector.load %arg3[%c0_8, %c2, %c0_9, %c0_10] : memref<1x4x2x128xf32, #tpu.memory_space<vmem>>, vector<1x1x2x128xf32>
    %10 = vector.shape_cast %9 : vector<1x1x2x128xf32> to vector<2x128xf32>
    %c0_11 = arith.constant 0 : index
    %c3 = arith.constant 3 : index
    %c0_12 = arith.constant 0 : index
    %c0_13 = arith.constant 0 : index
    %11 = vector.load %arg3[%c0_11, %c3, %c0_12, %c0_13] : memref<1x4x2x128xf32, #tpu.memory_space<vmem>>, vector<1x1x2x128xf32>
    %12 = vector.shape_cast %11 : vector<1x1x2x128xf32> to vector<2x128xf32>
    %13 = arith.maximumf %6, %8 : vector<2x128xf32>
    %14 = arith.maximumf %13, %10 : vector<2x128xf32>
    %15 = arith.maximumf %14, %12 : vector<2x128xf32>
    %16 = arith.subf %6, %15 : vector<2x128xf32>
    %17 = math.exp %16 : vector<2x128xf32>
    %18 = arith.subf %8, %15 : vector<2x128xf32>
    %19 = math.exp %18 : vector<2x128xf32>
    %20 = arith.subf %10, %15 : vector<2x128xf32>
    %21 = math.exp %20 : vector<2x128xf32>
    %22 = arith.subf %12, %15 : vector<2x128xf32>
    %23 = math.exp %22 : vector<2x128xf32>
    %24 = arith.addf %17, %19 : vector<2x128xf32>
    %25 = arith.addf %24, %21 : vector<2x128xf32>
    %26 = arith.addf %25, %23 : vector<2x128xf32>
    %27 = tpu.reciprocal %26 : vector<2x128xf32> -> vector<2x128xf32>
    %c0_14 = arith.constant 0 : index
    %c0_15 = arith.constant 0 : index
    %c0_16 = arith.constant 0 : index
    %c0_17 = arith.constant 0 : index
    %28 = vector.load %arg4[%c0_14, %c0_15, %c0_16, %c0_17] : memref<1x1x2x128xi32, #tpu.memory_space<vmem>>, vector<1x1x2x128xi32>
    %29 = vector.shape_cast %28 : vector<1x1x2x128xi32> to vector<2x128xi32>
    %30 = arith.mulf %17, %27 : vector<2x128xf32>
    %c0_i32_18 = arith.constant 0 : i32
    %31 = vector.broadcast %c0_i32_18 : i32 to vector<2x128xi32>
    %32 = arith.cmpi eq, %29, %31 : vector<2x128xi32>
    %cst = arith.constant 0.000000e+00 : f32
    %33 = vector.broadcast %cst : f32 to vector<2x128xf32>
    %34 = arith.select %32, %30, %33 : vector<2x128xi1>, vector<2x128xf32>
    %cst_19 = arith.constant 1.000000e+00 : f32
    %cst_20 = arith.constant 0.000000e+00 : f32
    %35 = vector.broadcast %cst_19 : f32 to vector<2x128xf32>
    %36 = vector.broadcast %cst_20 : f32 to vector<2x128xf32>
    %37 = arith.select %32, %35, %36 : vector<2x128xi1>, vector<2x128xf32>
    %38 = arith.addf %30, %37 : vector<2x128xf32>
    %c0_21 = arith.constant 0 : index
    %c0_22 = arith.constant 0 : index
    %c0_23 = arith.constant 0 : index
    %39 = vector.load %arg6[%c0_21, %c0_22, %c0_23] : memref<4x2x128xf32, #tpu.memory_space<vmem>>, vector<1x2x128xf32>
    %40 = vector.shape_cast %39 : vector<1x2x128xf32> to vector<2x128xf32>
    %41 = arith.addf %40, %34 : vector<2x128xf32>
    %c0_24 = arith.constant 0 : index
    %c0_25 = arith.constant 0 : index
    %c0_26 = arith.constant 0 : index
    %42 = vector.load %arg6[%c0_24, %c0_25, %c0_26] : memref<4x2x128xf32, #tpu.memory_space<vmem>>, vector<1x2x128xf32>
    %43 = vector.shape_cast %42 : vector<1x2x128xf32> to vector<2x128xf32>
    %44 = vector.shape_cast %41 : vector<2x128xf32> to vector<1x2x128xf32>
    tpu.vector_store %arg6[%c0_24, %c0_25, %c0_26], %44 {strides = array<i32>} : memref<4x2x128xf32, #tpu.memory_space<vmem>>, vector<1x2x128xf32>,
    %c0_27 = arith.constant 0 : index
    %c0_28 = arith.constant 0 : index
    %c0_29 = arith.constant 0 : index
    %45 = vector.load %arg7[%c0_27, %c0_28, %c0_29] : memref<4x2x128xf32, #tpu.memory_space<vmem>>, vector<1x2x128xf32>
    %46 = vector.shape_cast %45 : vector<1x2x128xf32> to vector<2x128xf32>
    %47 = arith.addf %46, %38 : vector<2x128xf32>
    %c0_30 = arith.constant 0 : index
    %c0_31 = arith.constant 0 : index
    %c0_32 = arith.constant 0 : index
    %48 = vector.load %arg7[%c0_30, %c0_31, %c0_32] : memref<4x2x128xf32, #tpu.memory_space<vmem>>, vector<1x2x128xf32>
    %49 = vector.shape_cast %48 : vector<1x2x128xf32> to vector<2x128xf32>
    %50 = vector.shape_cast %47 : vector<2x128xf32> to vector<1x2x128xf32>
    tpu.vector_store %arg7[%c0_30, %c0_31, %c0_32], %50 {strides = array<i32>} : memref<4x2x128xf32, #tpu.memory_space<vmem>>, vector<1x2x128xf32>,
    %51 = arith.mulf %19, %27 : vector<2x128xf32>
    %c1_i32 = arith.constant 1 : i32
    %52 = vector.broadcast %c1_i32 : i32 to vector<2x128xi32>
    %53 = arith.cmpi eq, %29, %52 : vector<2x128xi32>
    %cst_33 = arith.constant 0.000000e+00 : f32
    %54 = vector.broadcast %cst_33 : f32 to vector<2x128xf32>
    %55 = arith.select %53, %51, %54 : vector<2x128xi1>, vector<2x128xf32>
    %cst_34 = arith.constant 1.000000e+00 : f32
    %cst_35 = arith.constant 0.000000e+00 : f32
    %56 = vector.broadcast %cst_34 : f32 to vector<2x128xf32>
    %57 = vector.broadcast %cst_35 : f32 to vector<2x128xf32>
    %58 = arith.select %53, %56, %57 : vector<2x128xi1>, vector<2x128xf32>
    %59 = arith.addf %51, %58 : vector<2x128xf32>
    %c1_36 = arith.constant 1 : index
    %c0_37 = arith.constant 0 : index
    %c0_38 = arith.constant 0 : index
    %60 = vector.load %arg6[%c1_36, %c0_37, %c0_38] : memref<4x2x128xf32, #tpu.memory_space<vmem>>, vector<1x2x128xf32>
    %61 = vector.shape_cast %60 : vector<1x2x128xf32> to vector<2x128xf32>
    %62 = arith.addf %61, %55 : vector<2x128xf32>
    %c1_39 = arith.constant 1 : index
    %c0_40 = arith.constant 0 : index
    %c0_41 = arith.constant 0 : index
    %63 = vector.load %arg6[%c1_39, %c0_40, %c0_41] : memref<4x2x128xf32, #tpu.memory_space<vmem>>, vector<1x2x128xf32>
    %64 = vector.shape_cast %63 : vector<1x2x128xf32> to vector<2x128xf32>
    %65 = vector.shape_cast %62 : vector<2x128xf32> to vector<1x2x128xf32>
    tpu.vector_store %arg6[%c1_39, %c0_40, %c0_41], %65 {strides = array<i32>} : memref<4x2x128xf32, #tpu.memory_space<vmem>>, vector<1x2x128xf32>,
    %c1_42 = arith.constant 1 : index
    %c0_43 = arith.constant 0 : index
    %c0_44 = arith.constant 0 : index
    %66 = vector.load %arg7[%c1_42, %c0_43, %c0_44] : memref<4x2x128xf32, #tpu.memory_space<vmem>>, vector<1x2x128xf32>
    %67 = vector.shape_cast %66 : vector<1x2x128xf32> to vector<2x128xf32>
    %68 = arith.addf %67, %59 : vector<2x128xf32>
    %c1_45 = arith.constant 1 : index
    %c0_46 = arith.constant 0 : index
    %c0_47 = arith.constant 0 : index
    %69 = vector.load %arg7[%c1_45, %c0_46, %c0_47] : memref<4x2x128xf32, #tpu.memory_space<vmem>>, vector<1x2x128xf32>
    %70 = vector.shape_cast %69 : vector<1x2x128xf32> to vector<2x128xf32>
    %71 = vector.shape_cast %68 : vector<2x128xf32> to vector<1x2x128xf32>
    tpu.vector_store %arg7[%c1_45, %c0_46, %c0_47], %71 {strides = array<i32>} : memref<4x2x128xf32, #tpu.memory_space<vmem>>, vector<1x2x128xf32>,
    %72 = arith.mulf %21, %27 : vector<2x128xf32>
    %c2_i32 = arith.constant 2 : i32
    %73 = vector.broadcast %c2_i32 : i32 to vector<2x128xi32>
    %74 = arith.cmpi eq, %29, %73 : vector<2x128xi32>
    %cst_48 = arith.constant 0.000000e+00 : f32
    %75 = vector.broadcast %cst_48 : f32 to vector<2x128xf32>
    %76 = arith.select %74, %72, %75 : vector<2x128xi1>, vector<2x128xf32>
    %cst_49 = arith.constant 1.000000e+00 : f32
    %cst_50 = arith.constant 0.000000e+00 : f32
    %77 = vector.broadcast %cst_49 : f32 to vector<2x128xf32>
    %78 = vector.broadcast %cst_50 : f32 to vector<2x128xf32>
    %79 = arith.select %74, %77, %78 : vector<2x128xi1>, vector<2x128xf32>
    %80 = arith.addf %72, %79 : vector<2x128xf32>
    %c2_51 = arith.constant 2 : index
    %c0_52 = arith.constant 0 : index
    %c0_53 = arith.constant 0 : index
    %81 = vector.load %arg6[%c2_51, %c0_52, %c0_53] : memref<4x2x128xf32, #tpu.memory_space<vmem>>, vector<1x2x128xf32>
    %82 = vector.shape_cast %81 : vector<1x2x128xf32> to vector<2x128xf32>
    %83 = arith.addf %82, %76 : vector<2x128xf32>
    %c2_54 = arith.constant 2 : index
    %c0_55 = arith.constant 0 : index
    %c0_56 = arith.constant 0 : index
    %84 = vector.load %arg6[%c2_54, %c0_55, %c0_56] : memref<4x2x128xf32, #tpu.memory_space<vmem>>, vector<1x2x128xf32>
    %85 = vector.shape_cast %84 : vector<1x2x128xf32> to vector<2x128xf32>
    %86 = vector.shape_cast %83 : vector<2x128xf32> to vector<1x2x128xf32>
    tpu.vector_store %arg6[%c2_54, %c0_55, %c0_56], %86 {strides = array<i32>} : memref<4x2x128xf32, #tpu.memory_space<vmem>>, vector<1x2x128xf32>,
    %c2_57 = arith.constant 2 : index
    %c0_58 = arith.constant 0 : index
    %c0_59 = arith.constant 0 : index
    %87 = vector.load %arg7[%c2_57, %c0_58, %c0_59] : memref<4x2x128xf32, #tpu.memory_space<vmem>>, vector<1x2x128xf32>
    %88 = vector.shape_cast %87 : vector<1x2x128xf32> to vector<2x128xf32>
    %89 = arith.addf %88, %80 : vector<2x128xf32>
    %c2_60 = arith.constant 2 : index
    %c0_61 = arith.constant 0 : index
    %c0_62 = arith.constant 0 : index
    %90 = vector.load %arg7[%c2_60, %c0_61, %c0_62] : memref<4x2x128xf32, #tpu.memory_space<vmem>>, vector<1x2x128xf32>
    %91 = vector.shape_cast %90 : vector<1x2x128xf32> to vector<2x128xf32>
    %92 = vector.shape_cast %89 : vector<2x128xf32> to vector<1x2x128xf32>
    tpu.vector_store %arg7[%c2_60, %c0_61, %c0_62], %92 {strides = array<i32>} : memref<4x2x128xf32, #tpu.memory_space<vmem>>, vector<1x2x128xf32>,
    %93 = arith.mulf %23, %27 : vector<2x128xf32>
    %c3_i32 = arith.constant 3 : i32
    %94 = vector.broadcast %c3_i32 : i32 to vector<2x128xi32>
    %95 = arith.cmpi eq, %29, %94 : vector<2x128xi32>
    %cst_63 = arith.constant 0.000000e+00 : f32
    %96 = vector.broadcast %cst_63 : f32 to vector<2x128xf32>
    %97 = arith.select %95, %93, %96 : vector<2x128xi1>, vector<2x128xf32>
    %cst_64 = arith.constant 1.000000e+00 : f32
    %cst_65 = arith.constant 0.000000e+00 : f32
    %98 = vector.broadcast %cst_64 : f32 to vector<2x128xf32>
    %99 = vector.broadcast %cst_65 : f32 to vector<2x128xf32>
    %100 = arith.select %95, %98, %99 : vector<2x128xi1>, vector<2x128xf32>
    %101 = arith.addf %93, %100 : vector<2x128xf32>
    %c3_66 = arith.constant 3 : index
    %c0_67 = arith.constant 0 : index
    %c0_68 = arith.constant 0 : index
    %102 = vector.load %arg6[%c3_66, %c0_67, %c0_68] : memref<4x2x128xf32, #tpu.memory_space<vmem>>, vector<1x2x128xf32>
    %103 = vector.shape_cast %102 : vector<1x2x128xf32> to vector<2x128xf32>
    %104 = arith.addf %103, %97 : vector<2x128xf32>
    %c3_69 = arith.constant 3 : index
    %c0_70 = arith.constant 0 : index
    %c0_71 = arith.constant 0 : index
    %105 = vector.load %arg6[%c3_69, %c0_70, %c0_71] : memref<4x2x128xf32, #tpu.memory_space<vmem>>, vector<1x2x128xf32>
    %106 = vector.shape_cast %105 : vector<1x2x128xf32> to vector<2x128xf32>
    %107 = vector.shape_cast %104 : vector<2x128xf32> to vector<1x2x128xf32>
    tpu.vector_store %arg6[%c3_69, %c0_70, %c0_71], %107 {strides = array<i32>} : memref<4x2x128xf32, #tpu.memory_space<vmem>>, vector<1x2x128xf32>,
    %c3_72 = arith.constant 3 : index
    %c0_73 = arith.constant 0 : index
    %c0_74 = arith.constant 0 : index
    %108 = vector.load %arg7[%c3_72, %c0_73, %c0_74] : memref<4x2x128xf32, #tpu.memory_space<vmem>>, vector<1x2x128xf32>
    %109 = vector.shape_cast %108 : vector<1x2x128xf32> to vector<2x128xf32>
    %110 = arith.addf %109, %101 : vector<2x128xf32>
    %c3_75 = arith.constant 3 : index
    %c0_76 = arith.constant 0 : index
    %c0_77 = arith.constant 0 : index
    %111 = vector.load %arg7[%c3_75, %c0_76, %c0_77] : memref<4x2x128xf32, #tpu.memory_space<vmem>>, vector<1x2x128xf32>
    %112 = vector.shape_cast %111 : vector<1x2x128xf32> to vector<2x128xf32>
    %113 = vector.shape_cast %110 : vector<2x128xf32> to vector<1x2x128xf32>
    tpu.vector_store %arg7[%c3_75, %c0_76, %c0_77], %113 {strides = array<i32>} : memref<4x2x128xf32, #tpu.memory_space<vmem>>, vector<1x2x128xf32>,
    %c1_i32_78 = arith.constant 1 : i32
    %114 = arith.cmpi eq, %arg1, %c1_i32_78 : i32
    %c0_i32_79 = arith.constant 0 : i32
    %115 = arith.cmpi eq, %arg2, %c0_i32_79 : i32
    %116 = arith.andi %114, %115 : i1
    %117 = arith.extui %116 : i1 to i32
    %c0_i32_80 = arith.constant 0 : i32
    %118 = arith.cmpi ne, %117, %c0_i32_80 : i32
    scf.if %118 {
      %c0_81 = arith.constant 0 : index
      %c0_82 = arith.constant 0 : index
      %c0_83 = arith.constant 0 : index
      %119 = vector.load %arg6[%c0_81, %c0_82, %c0_83] : memref<4x2x128xf32, #tpu.memory_space<vmem>>, vector<4x2x128xf32>
      %c0_84 = arith.constant 0 : index
      %c0_85 = arith.constant 0 : index
      %c0_86 = arith.constant 0 : index
      %c0_87 = arith.constant 0 : index
      %c0_88 = arith.constant 0 : index
      %120 = vector.load %arg5[%c0_84, %c0_85, %c0_86, %c0_87, %c0_88] : memref<1x2x4x2x128xf32, #tpu.memory_space<vmem>>, vector<1x1x4x2x128xf32>
      %121 = vector.shape_cast %120 : vector<1x1x4x2x128xf32> to vector<4x2x128xf32>
      %122 = vector.shape_cast %119 : vector<4x2x128xf32> to vector<1x1x4x2x128xf32>
      tpu.vector_store %arg5[%c0_84, %c0_85, %c0_86, %c0_87, %c0_88], %122 {strides = array<i32>} : memref<1x2x4x2x128xf32, #tpu.memory_space<vmem>>, vector<1x1x4x2x128xf32>,
      %c0_89 = arith.constant 0 : index
      %c0_90 = arith.constant 0 : index
      %c0_91 = arith.constant 0 : index
      %123 = vector.load %arg7[%c0_89, %c0_90, %c0_91] : memref<4x2x128xf32, #tpu.memory_space<vmem>>, vector<4x2x128xf32>
      %c0_92 = arith.constant 0 : index
      %c1_93 = arith.constant 1 : index
      %c0_94 = arith.constant 0 : index
      %c0_95 = arith.constant 0 : index
      %c0_96 = arith.constant 0 : index
      %124 = vector.load %arg5[%c0_92, %c1_93, %c0_94, %c0_95, %c0_96] : memref<1x2x4x2x128xf32, #tpu.memory_space<vmem>>, vector<1x1x4x2x128xf32>
      %125 = vector.shape_cast %124 : vector<1x1x4x2x128xf32> to vector<4x2x128xf32>
      %126 = vector.shape_cast %123 : vector<4x2x128xf32> to vector<1x1x4x2x128xf32>
      tpu.vector_store %arg5[%c0_92, %c1_93, %c0_94, %c0_95, %c0_96], %126 {strides = array<i32>} : memref<1x2x4x2x128xf32, #tpu.memory_space<vmem>>, vector<1x1x4x2x128xf32>,
    } else {
    }
    return
  }
  func.func @transform_0(%arg0: i32, %arg1: i32, %arg2: i32) -> (i32, i32, i32, i32) {
    %c1_i32 = arith.constant 1 : i32
    %0 = arith.muli %arg0, %c1_i32 : i32
    %1 = arith.addi %0, %arg2 : i32
    %c0_i32 = arith.constant 0 : i32
    %c0_i32_0 = arith.constant 0 : i32
    %c0_i32_1 = arith.constant 0 : i32
    return %arg1, %c0_i32, %1, %c0_i32_0 : i32, i32, i32, i32
  }
  func.func @transform_1(%arg0: i32, %arg1: i32, %arg2: i32) -> (i32, i32, i32, i32) {
    %c1_i32 = arith.constant 1 : i32
    %0 = arith.muli %arg0, %c1_i32 : i32
    %1 = arith.addi %0, %arg2 : i32
    %c0_i32 = arith.constant 0 : i32
    %c0_i32_0 = arith.constant 0 : i32
    %c0_i32_1 = arith.constant 0 : i32
    return %arg1, %c0_i32, %1, %c0_i32_0 : i32, i32, i32, i32
  }
  func.func @transform_2(%arg0: i32, %arg1: i32, %arg2: i32) -> (i32, i32, i32, i32, i32) {
    %c0_i32 = arith.constant 0 : i32
    %c0_i32_0 = arith.constant 0 : i32
    %c0_i32_1 = arith.constant 0 : i32
    %c0_i32_2 = arith.constant 0 : i32
    %c0_i32_3 = arith.constant 0 : i32
    return %arg0, %c0_i32, %c0_i32_0, %c0_i32_1, %c0_i32_2 : i32, i32, i32, i32, i32
  }
}

</mosaic_0001>

<llo_original>
// kernel: tpu_custom_call.1
$region0: #{tpu_custom_call.1}
  #allocation0 [shape = 'u32[]', space=smem, size = 0x4, offset = 0x4, fixed_abs, tag = 'smem constant byte address 0x4 - core index']
  #allocation1 [shape = 'u32[144,128]{1,0:T(1,128)}', space=vmem, size = 0x12000, scoped, tag = 'internal scratch']
  #allocation2 [shape = 'f32[4,2,128]{2,1,0:T(2,128)}', space=vmem, size = 0x1000, scoped, tag = 'scratch operand']
  #allocation3 [shape = 'f32[4,2,128]{2,1,0:T(2,128)}', space=vmem, size = 0x1000, scoped, tag = 'scratch operand']
  %s0 = inlined_call_operand.hbm [shape: f32[2,4,2,128], index: 0, kind: input, shape index: {}]
  %s1 = inlined_call_operand.hbm [shape: s32[2,1,2,128], index: 1, kind: input, shape index: {}]
  %s2 = inlined_call_operand.hbm [shape: f32[1,2,4,2,128], index: 2, kind: output, shape index: {}]
  %s3 = sld [smem:[#allocation0]]
  $region57: #{tpu_custom_call.1} parent=0
    _
  %s5 = ssub.s32 1, %s3
  %s6 = scalar_select 0, %s5, %s3
  $region1: #{tpu_custom_call.1} parent=0
    #allocation4 [shape = 'u8[8192]{0}', space=vmem, size = 0x2000, scoped, tag = 'input window, operand 0']
    #allocation5 [shape = 's32[2]{0}', space=sflag, size = 0x8, scoped, tag = 'scoped memory for tpu_custom_call.1']
    #allocation6 [shape = 's32[2]{0}', space=sflag, size = 0x8, scoped, tag = 'scoped memory for tpu_custom_call.1']
    #allocation7 [shape = 'u8[2048]{0}', space=vmem, size = 0x800, scoped, tag = 'input window, operand 1']
    #allocation8 [shape = 's32[2]{0}', space=sflag, size = 0x8, scoped, tag = 'scoped memory for tpu_custom_call.1']
    #allocation9 [shape = 'u8[8192]{0}', space=vmem, size = 0x2000, scoped, tag = 'output window, operand 0, single buffered']
    %7 = vsyncpa [#allocation5], 0
    %s8 = scalar_lea.sflag [#allocation5], 1
    %9 = vsyncpa %s8, 0
    %10 = vsyncpa [#allocation8], 0
    %s11 = scalar_lea.sflag [#allocation8], 1
    %12 = vsyncpa %s11, 0
    %13 = vsyncpa [#allocation6], 0
    loop: start=0, step=1, limit=4
    $region2: #{tpu_custom_call.1} parent=1 // loop_pre_header
      _
    $region3: #{tpu_custom_call.1} parent=1 // loop_header
      %s15 = sphi 0, %s19
      %p16 = scmp.ge.s32.totalorder %s15, 4
      %s22 = sphi 0, %s41
      %s23 = sphi 0, %s37
      %s24 = sphi 0, %s33
      %s25 = sphi 0, %s22
      %s26 = sphi 0, %s23
      %s27 = sphi 0, %s24
      %s28 = sphi 0, %s25
      %s29 = sphi 0, %s26
      %s30 = sphi 0, %s27
      %s48 = sphi 0, %s50
      %s51 = sphi 0, %s48
      %s52 = sphi 0, %s51
      %s68 = sphi 0, %s52
      %s78 = sphi 0, %s80
      %s81 = sphi 0, %s78
      %s82 = sphi 0, %s81
      %s98 = sphi 0, %s82
      %s104 = sphi 0, %s106
      %s107 = sphi 0, %s104
      %s108 = sphi 0, %s107
      %s124 = sphi 0, %s108
    $region4: #{tpu_custom_call.1} parent=1 // loop_header_branch
      %18 = sbr.rel (%p16) target = $region8
    $region5: #{tpu_custom_call.1} parent=1 // loop_body
      %s20 = ssub.s32 %s15, 1
      %s21 = ssub.s32 %s15, 2
      %s31 = sadd.s32 1, %s24
      %p32 = scmp.ge.s32.totalorder %s31, 1
      %s33 = scalar_select %p32, 0, %s31
      %s34 = sadd.s32 1, %s23
      %s35 = scalar_select %p32, %s34, %s23
      %p36 = scmp.ge.s32.totalorder %s35, 2
      %s37 = scalar_select %p36, 0, %s35
      %s38 = sadd.s32 1, %s22
      %s39 = scalar_select %p36, %s38, %s22
      %p40 = scmp.ge.s32.totalorder %s39, 1
      %s41 = scalar_select %p40, 0, %s39
      %s42 = sadd.s32 %s22, %s24
      %s43 = sadd.s32 %s41, %s33
      %s44 = ssub.s32 %s23, %s37
      %s45 = ssub.s32 %s42, %s43
      %s46 = sor.u32 %s44, %s45
      %p47 = scmp.eq.s32.totalorder %s46, 0
      %s49 = sadd.s32 %s48, 1
      %s50 = scalar_select %p47, %s48, %s49
      %p53 = pneg %p47
      %p54 = scmp.eq.s32.totalorder %s15, 1
      %p55 = por %p53, %p54
      %p56 = scmp.ne.s32.totalorder %s48, %s51
      %p57 = scmp.eq.s32.totalorder %s15, 0
      %p58 = por %p56, %p57
      %p59 = scmp.ne.s32.totalorder %s48, %s51
      %p60 = scmp.eq.s32.totalorder %s20, 1
      %p61 = por %p59, %p60
      %p62 = scmp.ne.s32.totalorder %s51, %s52
      %p63 = scmp.eq.s32.totalorder %s20, 0
      %p64 = por %p62, %p63
      %p65 = scmp.ne.s32.totalorder %s51, %s52
      %p66 = scmp.eq.s32.totalorder %s21, 1
      %p67 = por %p65, %p66
      %p69 = scmp.ne.s32.totalorder %s52, %s68
      %p70 = scmp.eq.s32.totalorder %s21, 0
      %p71 = por %p69, %p70
      %s72 = sadd.s32 %s22, %s24
      %s73 = sadd.s32 %s41, %s33
      %s74 = ssub.s32 %s23, %s37
      %s75 = ssub.s32 %s72, %s73
      %s76 = sor.u32 %s74, %s75
      %p77 = scmp.eq.s32.totalorder %s76, 0
      %s79 = sadd.s32 %s78, 1
      %s80 = scalar_select %p77, %s78, %s79
      %p83 = pneg %p77
      %p84 = scmp.eq.s32.totalorder %s15, 1
      %p85 = por %p83, %p84
      %p86 = scmp.ne.s32.totalorder %s78, %s81
      %p87 = scmp.eq.s32.totalorder %s15, 0
      %p88 = por %p86, %p87
      %p89 = scmp.ne.s32.totalorder %s78, %s81
      %p90 = scmp.eq.s32.totalorder %s20, 1
      %p91 = por %p89, %p90
      %p92 = scmp.ne.s32.totalorder %s81, %s82
      %p93 = scmp.eq.s32.totalorder %s20, 0
      %p94 = por %p92, %p93
      %p95 = scmp.ne.s32.totalorder %s81, %s82
      %p96 = scmp.eq.s32.totalorder %s21, 1
      %p97 = por %p95, %p96
      %p99 = scmp.ne.s32.totalorder %s82, %s98
      %p100 = scmp.eq.s32.totalorder %s21, 0
      %p101 = por %p99, %p100
      %s102 = ssub.s32 %s22, %s41
      %p103 = scmp.eq.s32.totalorder %s102, 0
      %s105 = sadd.s32 %s104, 1
      %s106 = scalar_select %p103, %s104, %s105
      %p109 = pneg %p103
      %p110 = scmp.eq.s32.totalorder %s15, 1
      %p111 = por %p109, %p110
      %p112 = scmp.ne.s32.totalorder %s104, %s107
      %p113 = scmp.eq.s32.totalorder %s15, 0
      %p114 = por %p112, %p113
      %p115 = scmp.ne.s32.totalorder %s104, %s107
      %p116 = scmp.eq.s32.totalorder %s20, 1
      %p117 = por %p115, %p116
      %p118 = scmp.ne.s32.totalorder %s107, %s108
      %p119 = scmp.eq.s32.totalorder %s20, 0
      %p120 = por %p118, %p119
      %p121 = scmp.ne.s32.totalorder %s107, %s108
      %p122 = scmp.eq.s32.totalorder %s21, 1
      %p123 = por %p121, %p122
      %p125 = scmp.ne.s32.totalorder %s108, %s124
      %p126 = scmp.eq.s32.totalorder %s21, 0
      %p127 = por %p125, %p126
      %p128 = scmp.le.s32.totalorder 1, %s15
      %p129 = scmp.lt.s32.totalorder %s15, 3
      %p130 = pnand %p128, %p129
      %p131 = pneg %p130
      // Predicated region
      $region9: #{tpu_custom_call.1} parent=5 // pred_check
        _
      $region10: #{tpu_custom_call.1} parent=5 // pred_check_branch
        %133 = sbr.rel (%p130) target = $region12
      $region11: #{tpu_custom_call.1} parent=5 // pred_region
        %s134 = ssub.s32 %s15, 1
      $region12: #{tpu_custom_call.1} parent=5 // pred_fallthru
        _
      %p135 = scmp.lt.s32.totalorder %s15, 2
      // Predicated region
      $region13: #{tpu_custom_call.1} parent=5 // pred_check
        %p136 = pneg %p135
      $region14: #{tpu_custom_call.1} parent=5 // pred_check_branch
        %138 = sbr.rel (%p136) target = $region16
      $region15: #{tpu_custom_call.1} parent=5 // pred_region
        // Predicated region
        $region17: #{tpu_custom_call.1} parent=15 // pred_check
          %p139 = pneg %p58
        $region18: #{tpu_custom_call.1} parent=15 // pred_check_branch
          %141 = sbr.rel (%p139) target = $region20
        $region19: #{tpu_custom_call.1} parent=15 // pred_region
          %s142 = sand.u32 %s48, 1
          %s143 = scalar_lea.sflag [#allocation5], %s142
          %s144 = sand.u32 %s48, 1
          %s145 = smul.addr %s144, 8
          %s146 = scalar_lea.vmem [#allocation4], %s145
          %s147 = sadd.s32 %s22, %s24
          %s149 = ssub.s32 128, 128
          %150 = vsyncadd %s143, %s149
          %s151 = smul.addr %s23, 4
          %s152 = sadd.s32 %s147, %s151
          %s153 = smul.addr %s152, 32
          %s154 = scalar_lea.hbm %s0, %s153
          %s155 = sshll.u32 %s146, 4
          %s156 = int_to_ptr.vmem [resolvable:$true] %s155
          %161 = dma.hbm_to_vmem [thread:$0]  %s154, 128, %s156, %s143, 32, 32, 2
        $region20: #{tpu_custom_call.1} parent=15 // pred_fallthru
          _
        // Predicated region
        $region21: #{tpu_custom_call.1} parent=15 // pred_check
          %p162 = pneg %p88
        $region22: #{tpu_custom_call.1} parent=15 // pred_check_branch
          %164 = sbr.rel (%p162) target = $region24
        $region23: #{tpu_custom_call.1} parent=15 // pred_region
          %s165 = sand.u32 %s78, 1
          %s166 = scalar_lea.sflag [#allocation8], %s165
          %s167 = sand.u32 %s78, 1
          %s168 = smul.addr %s167, 2
          %s169 = scalar_lea.vmem [#allocation7], %s168
          %s170 = sadd.s32 %s22, %s24
          %s172 = ssub.s32 32, 32
          %173 = vsyncadd %s166, %s172
          %s174 = sadd.s32 %s170, %s23
          %s175 = smul.addr %s174, 32
          %s176 = scalar_lea.hbm %s1, %s175
          %s178 = sshll.u32 %s169, 4
          %s179 = int_to_ptr.vmem [resolvable:$true] %s178
          %181 = dma.hbm_to_vmem [thread:$0]  %s176, 32, %s179, %s166
        $region24: #{tpu_custom_call.1} parent=15 // pred_fallthru
          _
      $region16: #{tpu_custom_call.1} parent=5 // pred_fallthru
        _
      %p182 = scmp.le.s32.totalorder 1, %s15
      %p183 = scmp.lt.s32.totalorder %s15, 3
      %p184 = pnand %p182, %p183
      %p185 = pneg %p184
      // Predicated region
      $region25: #{tpu_custom_call.1} parent=5 // pred_check
        _
      $region26: #{tpu_custom_call.1} parent=5 // pred_check_branch
        %187 = sbr.rel (%p184) target = $region28
      $region27: #{tpu_custom_call.1} parent=5 // pred_region
        %s188 = ssub.s32 %s15, 1
        %s189 = sand.u32 %s51, 1
        %s190 = scalar_lea.sflag [#allocation5], %s189
        %s191 = sand.u32 %s51, 1
        %s192 = smul.addr %s191, 8
        %s193 = scalar_lea.vmem [#allocation4], %s192
        // Predicated region
        $region29: #{tpu_custom_call.1} parent=27 // pred_check
          %p194 = pneg %p64
        $region30: #{tpu_custom_call.1} parent=27 // pred_check_branch
          %196 = sbr.rel (%p194) target = $region32
        $region31: #{tpu_custom_call.1} parent=27 // pred_region
          %197 = dma.done %s190, 128
        $region32: #{tpu_custom_call.1} parent=27 // pred_fallthru
          _
        %s198 = sand.u32 %s81, 1
        %s199 = scalar_lea.sflag [#allocation8], %s198
        %s200 = sand.u32 %s81, 1
        %s201 = smul.addr %s200, 2
        %s202 = scalar_lea.vmem [#allocation7], %s201
        // Predicated region
        $region33: #{tpu_custom_call.1} parent=27 // pred_check
          %p203 = pneg %p94
        $region34: #{tpu_custom_call.1} parent=27 // pred_check_branch
          %205 = sbr.rel (%p203) target = $region36
        $region35: #{tpu_custom_call.1} parent=27 // pred_region
          %206 = dma.done %s199, 32
        $region36: #{tpu_custom_call.1} parent=27 // pred_fallthru
          _
        %s207 = sand.u32 %s51, 1
        %s208 = scalar_lea.sflag [#allocation5], %s207
        %s209 = sand.u32 %s51, 1
        %s210 = smul.addr %s209, 8
        %s211 = scalar_lea.vmem [#allocation4], %s210
        %p212 = pneg %p64
        %p213 = pneg %p61
        %s214 = sand.u32 %s81, 1
        %s215 = scalar_lea.sflag [#allocation8], %s214
        %s216 = sand.u32 %s81, 1
        %s217 = smul.addr %s216, 2
        %s218 = scalar_lea.vmem [#allocation7], %s217
        %p219 = pneg %p94
        %p220 = pneg %p91
        %p221 = pneg %p120
        %p222 = pneg %p117
        %s223 = sadd.s32 %s25, %s27
        %s224 = sadd.s32 %s25, %s27
        %p225 = scmp.eq.s32.totalorder %s26, 0
        %p226 = scmp.eq.s32.totalorder %s27, 0
        %p227 = pnand %p225, %p226
        %p228 = pneg %p227
        // Predicated region
        $region37: #{tpu_custom_call.1} parent=27 // pred_check
          _
        $region38: #{tpu_custom_call.1} parent=27 // pred_check_branch
          %230 = sbr.rel (%p227) target = $region40
        $region39: #{tpu_custom_call.1} parent=27 // pred_region
          %231 = vst [vmem:[#allocation2] sm:$0x3] 0.0
          %232 = vst [vmem:[#allocation2 + $0x2] sm:$0x3] 0.0
          %233 = vst [vmem:[#allocation2 + $0x4] sm:$0x3] 0.0
          %234 = vst [vmem:[#allocation2 + $0x6] sm:$0x3] 0.0
          %235 = vst [vmem:[#allocation3] sm:$0x3] 0.0
          %236 = vst [vmem:[#allocation3 + $0x2] sm:$0x3] 0.0
          %237 = vst [vmem:[#allocation3 + $0x4] sm:$0x3] 0.0
          %238 = vst [vmem:[#allocation3 + $0x6] sm:$0x3] 0.0
        $region40: #{tpu_custom_call.1} parent=27 // pred_fallthru
          _
        %v239 = vld [vmem:[%s193] sm:$0x3]
        %s240 = scalar_lea.vmem %s193, 2 [#allocation4]
        %v241 = vld [vmem:[%s240] sm:$0x3]
        %s242 = scalar_lea.vmem %s193, 4 [#allocation4]
        %v243 = vld [vmem:[%s242] sm:$0x3]
        %s244 = scalar_lea.vmem %s193, 6 [#allocation4]
        %v245 = vld [vmem:[%s244] sm:$0x3]
        %v246 = vmax.f32 %v239, %v241
        %v247 = vmax.f32 %v246, %v243
        %v248 = vmax.f32 %v247, %v245
        %v249 = vsub.f32 %v239, %v248
        %v250 = vmul.f32 %v249, 1.442695
        %v251 = vpow.pop %v250
        %v252 = vsub.f32 %v241, %v248
        %v253 = vmul.f32 %v252, 1.442695
        %v254 = vpow.pop %v253
        %v255 = vsub.f32 %v243, %v248
        %v256 = vmul.f32 %v255, 1.442695
        %v257 = vpow.pop %v256
        %v258 = vsub.f32 %v245, %v248
        %v259 = vmul.f32 %v258, 1.442695
        %v260 = vpow.pop %v259
        %v261 = vadd.f32 %v251, %v254
        %v262 = vadd.f32 %v261, %v257
        %v263 = vadd.f32 %v262, %v260
        %v264 = vrcp.pop %v263
        %v265 = vld [vmem:[%s202] sm:$0x3]
        %v266 = vmul.f32 %v251, %v264
        %vm267 = vcmp.eq.s32.totalorder %v265, 0
        %v268 = vsel %vm267, %v266, 0.0
        %v269 = vsel %vm267, 1.0, 0.0
        %v270 = vadd.f32 %v266, %v269
        %v271 = vld [vmem:[#allocation2] sm:$0x3]
        %v272 = vadd.f32 %v271, %v268
        %273 = vst [vmem:[#allocation2] sm:$0x3] %v272
        %v274 = vld [vmem:[#allocation3] sm:$0x3]
        %v275 = vadd.f32 %v274, %v270
        %276 = vst [vmem:[#allocation3] sm:$0x3] %v275
        %v277 = vmul.f32 %v254, %v264
        %vm278 = vcmp.eq.s32.totalorder %v265, 1
        %v279 = vsel %vm278, %v277, 0.0
        %v280 = vsel %vm278, 1.0, 0.0
        %v281 = vadd.f32 %v277, %v280
        %s282 = scalar_lea.vmem [#allocation2], 2
        %v283 = vld [vmem:[%s282] sm:$0x3]
        %v284 = vadd.f32 %v283, %v279
        %285 = vst [vmem:[%s282] sm:$0x3] %v284
        %s286 = scalar_lea.vmem [#allocation3], 2
        %v287 = vld [vmem:[%s286] sm:$0x3]
        %v288 = vadd.f32 %v287, %v281
        %289 = vst [vmem:[%s286] sm:$0x3] %v288
        %v290 = vmul.f32 %v257, %v264
        %vm291 = vcmp.eq.s32.totalorder %v265, 2
        %v292 = vsel %vm291, %v290, 0.0
        %v293 = vsel %vm291, 1.0, 0.0
        %v294 = vadd.f32 %v290, %v293
        %s295 = scalar_lea.vmem [#allocation2], 4
        %v296 = vld [vmem:[%s295] sm:$0x3]
        %v297 = vadd.f32 %v296, %v292
        %298 = vst [vmem:[%s295] sm:$0x3] %v297
        %s299 = scalar_lea.vmem [#allocation3], 4
        %v300 = vld [vmem:[%s299] sm:$0x3]
        %v301 = vadd.f32 %v300, %v294
        %302 = vst [vmem:[%s299] sm:$0x3] %v301
        %v303 = vmul.f32 %v260, %v264
        %vm304 = vcmp.eq.s32.totalorder %v265, 3
        %v305 = vsel %vm304, %v303, 0.0
        %v306 = vsel %vm304, 1.0, 0.0
        %v307 = vadd.f32 %v303, %v306
        %s308 = scalar_lea.vmem [#allocation2], 6
        %v309 = vld [vmem:[%s308] sm:$0x3]
        %v310 = vadd.f32 %v309, %v305
        %311 = vst [vmem:[%s308] sm:$0x3] %v310
        %s312 = scalar_lea.vmem [#allocation3], 6
        %v313 = vld [vmem:[%s312] sm:$0x3]
        %v314 = vadd.f32 %v313, %v307
        %315 = vst [vmem:[%s312] sm:$0x3] %v314
        %p316 = scmp.eq.s32.totalorder %s26, 1
        %p317 = pnand %p316, %p226
        %p318 = pneg %p317
        // Predicated region
        $region41: #{tpu_custom_call.1} parent=27 // pred_check
          _
        $region42: #{tpu_custom_call.1} parent=27 // pred_check_branch
          %320 = sbr.rel (%p317) target = $region44
        $region43: #{tpu_custom_call.1} parent=27 // pred_region
          %v321 = vld [vmem:[#allocation2] sm:$0x3]
          %v322 = vld [vmem:[#allocation2 + $0x2] sm:$0x3]
          %v323 = vld [vmem:[#allocation2 + $0x4] sm:$0x3]
          %v324 = vld [vmem:[#allocation2 + $0x6] sm:$0x3]
          %325 = vst [vmem:[#allocation9] sm:$0x3] %v321
          %326 = vst [vmem:[#allocation9 + $0x2] sm:$0x3] %v322
          %327 = vst [vmem:[#allocation9 + $0x4] sm:$0x3] %v323
          %328 = vst [vmem:[#allocation9 + $0x6] sm:$0x3] %v324
          %v329 = vld [vmem:[#allocation3] sm:$0x3]
          %v330 = vld [vmem:[#allocation3 + $0x2] sm:$0x3]
          %v331 = vld [vmem:[#allocation3 + $0x4] sm:$0x3]
          %v332 = vld [vmem:[#allocation3 + $0x6] sm:$0x3]
          %s333 = scalar_lea.vmem [#allocation9], 8
          %334 = vst [vmem:[%s333] sm:$0x3] %v329
          %335 = vst [vmem:[%s333 + $0x2] sm:$0x3] %v330
          %336 = vst [vmem:[%s333 + $0x4] sm:$0x3] %v331
          %337 = vst [vmem:[%s333 + $0x6] sm:$0x3] %v332
        $region44: #{tpu_custom_call.1} parent=27 // pred_fallthru
          _
        // Predicated region
        $region45: #{tpu_custom_call.1} parent=27 // pred_check
          %p338 = pneg %p117
        $region46: #{tpu_custom_call.1} parent=27 // pred_check_branch
          %340 = sbr.rel (%p338) target = $region48
        $region47: #{tpu_custom_call.1} parent=27 // pred_region
          %s342 = ssub.s32 256, 256
          %343 = vsyncadd [#allocation6], %s342
          %s344 = smul.addr %s25, 8
          %s345 = smul.addr %s344, 32
          %s346 = scalar_lea.hbm %s2, %s345
          %s347 = sshll.u32 [#allocation9], 4
          %s348 = int_to_ptr.vmem [resolvable:$true] %s347
          %353 = dma.vmem_to_hbm [thread:$0]  %s348, 256, %s346, [#allocation6], 32, 32, 2
        $region48: #{tpu_custom_call.1} parent=27 // pred_fallthru
          _
        // Predicated region
        $region49: #{tpu_custom_call.1} parent=27 // pred_check
          %p354 = pneg %p117
        $region50: #{tpu_custom_call.1} parent=27 // pred_check_branch
          %356 = sbr.rel (%p354) target = $region52
        $region51: #{tpu_custom_call.1} parent=27 // pred_region
          %357 = dma.done [#allocation6], 256
        $region52: #{tpu_custom_call.1} parent=27 // pred_fallthru
          _
      $region28: #{tpu_custom_call.1} parent=5 // pred_fallthru
        _
      %p358 = scmp.le.s32.totalorder 2, %s15
      // Predicated region
      $region53: #{tpu_custom_call.1} parent=5 // pred_check
        %p359 = pneg %p358
      $region54: #{tpu_custom_call.1} parent=5 // pred_check_branch
        %361 = sbr.rel (%p359) target = $region56
      $region55: #{tpu_custom_call.1} parent=5 // pred_region
        %s362 = ssub.s32 %s15, 2
      $region56: #{tpu_custom_call.1} parent=5 // pred_fallthru
        _
    $region6: #{tpu_custom_call.1} parent=1 // loop_footer
      %s19 = sadd.s32 1, %s15
    $region7: #{tpu_custom_call.1} parent=1 // loop_footer_branch
      %14 = sbr.rel target = $region3
    $region8: #{tpu_custom_call.1} parent=1 // loop_exit
      _
    %363 = vsyncpa [#allocation5], 1
    %s364 = scalar_lea.sflag [#allocation5], 1
    %365 = vsyncpa %s364, 1
    %366 = vsyncpa [#allocation8], 1
    %s367 = scalar_lea.sflag [#allocation8], 1
    %368 = vsyncpa %s367, 1
    %369 = vsyncpa [#allocation6], 1
    %s370 = scalar_lea.sflag [#allocation6], 1
    %371 = vsyncpa %s370, 1

</llo_original>
